<compile_context>
chip_gen: v7x
topology: tpu7x:2x2x1
jax: 0.10.0
libtpu: 0.0.40
codegen_flags: <defaults>
</compile_context>

<pallas_src>
import functools

import jax
import jax.numpy as jnp
from jax.experimental import pallas as pl
from jax.experimental.pallas import tpu as pltpu


def _lf_fc_kernel(x_ref, w_ref, y_ref):
    # x_ref: (rows, inner_nc + latent + 1)  -- last column is the constant 1 (bias trick)
    # w_ref: (inner_nc + latent + 1, outer_nc) -- last row is the bias
    # y_ref: (rows, outer_nc)
    y = jnp.dot(x_ref[...], w_ref[...], preferred_element_type=jnp.float32)
    # LeakyReLU(negative_slope=0.2); y>=0 matches PyTorch (identical at y==0 anyway).
    y_ref[...] = jnp.where(y >= 0, y, 0.2 * y).astype(y_ref.dtype)


def prepare_params(weight, bias, *, dtype=jnp.float32):
    """One-time parameter packing (do NOT call per forward).

    weight: PyTorch-layout (outer_nc, inner_nc + latent_features)
    bias  : (outer_nc,)
    Returns a single (inner_nc + latent_features + 1, outer_nc) matrix with the bias
    folded in as the last row.
    """
    w_t = jnp.transpose(weight).astype(dtype)                 # (K, outer_nc)
    b_row = bias.reshape(1, -1).astype(dtype)                 # (1, outer_nc)
    return jnp.concatenate([w_t, b_row], axis=0)              # (K+1, outer_nc)


def _fc_call(x_aug, w_packed, outer_nc):
    rows = x_aug.shape[0]
    return pl.pallas_call(
        _lf_fc_kernel,
        out_shape=jax.ShapeDtypeStruct((rows, outer_nc), jnp.float32),
        in_specs=[
            pl.BlockSpec(memory_space=pltpu.MemorySpace.VMEM),
            pl.BlockSpec(memory_space=pltpu.MemorySpace.VMEM),
        ],
        out_specs=pl.BlockSpec(memory_space=pltpu.MemorySpace.VMEM),
    )(x_aug, w_packed)


@functools.partial(jax.jit, static_argnames=("inner_nc", "outer_nc"))
def lf_fully_connected_block(x, w_packed, *, inner_nc, outer_nc):
    """x = (x0, latent) with x0 (1, inner_nc, 1, 1), latent (1, latent_features).

    w_packed must come from prepare_params() (bias already folded in).
    """
    x0, latent = x
    dt = w_packed.dtype
    one = jnp.ones((1, 1), dt)
    # Single concat builds the augmented row [x0_flat | latent | 1].
    x_aug = jnp.concatenate(
        [x0.reshape(1, inner_nc).astype(dt), latent.astype(dt), one], axis=1
    )
    y = _fc_call(x_aug, w_packed, outer_nc)
    return y.reshape(1, outer_nc, 1, 1), latent


@functools.partial(jax.jit, static_argnames=("inner_nc", "outer_nc"))
def lf_fully_connected_block_batched(x0_batch, latent_batch, w_packed, *, inner_nc, outer_nc):
    """Batch N independent invocations into ONE pallas_call (one bigger matmul).

    x0_batch:     (N, inner_nc, 1, 1)
    latent_batch: (N, latent_features)
    Returns (y (N, outer_nc, 1, 1), latent_batch).
    """
    n = x0_batch.shape[0]
    dt = w_packed.dtype
    ones = jnp.ones((n, 1), dt)
    x_aug = jnp.concatenate(
        [x0_batch.reshape(n, inner_nc).astype(dt), latent_batch.astype(dt), ones], axis=1
    )
    y = _fc_call(x_aug, w_packed, outer_nc)
    return y.reshape(n, outer_nc, 1, 1), latent_batch


def _reference(x, weight, bias, *, inner_nc, outer_nc):
    """Plain-JAX reference mirroring the PyTorch forward."""
    x0, latent = x
    x_ = jnp.concatenate([x0.reshape(1, inner_nc), latent], axis=1)
    y = x_ @ jnp.transpose(weight) + bias
    y = jnp.where(y >= 0, y, 0.2 * y)
    return y.reshape(1, outer_nc, 1, 1), latent


if __name__ == "__main__":
    inner_nc = 32
    outer_nc = 16
    latent_features = 8

    key = jax.random.PRNGKey(0)
    k_x0, k_lat, k_w, k_b, k_x0b, k_latb = jax.random.split(key, 6)

    # nn.Linear(inner_nc + latent_features, outer_nc, bias=True) params (PyTorch layout).
    fan_in = inner_nc + latent_features
    bound = 1.0 / (fan_in ** 0.5)
    weight = jax.random.uniform(k_w, (outer_nc, fan_in), jnp.float32, -bound, bound)
    bias = jax.random.uniform(k_b, (outer_nc,), jnp.float32, -bound, bound)

    # One-time packing (hoisted out of the forward path).
    w_packed = prepare_params(weight, bias)

    # Inputs: x[0] is an NCHW conv feature (1, inner_nc, 1, 1); x[1] is (1, latent_features).
    x0 = jax.random.normal(k_x0, (1, inner_nc, 1, 1), jnp.float32)
    latent = jax.random.normal(k_lat, (1, latent_features), jnp.float32)

    y, lat_out = lf_fully_connected_block(
        (x0, latent), w_packed, inner_nc=inner_nc, outer_nc=outer_nc
    )
    jax.block_until_ready(y)
    jax.block_until_ready(lat_out)

    # Correctness vs plain-JAX reference.
    y_ref, lat_ref = _reference((x0, latent), weight, bias, inner_nc=inner_nc, outer_nc=outer_nc)
    assert y.shape == (1, outer_nc, 1, 1)
    assert lat_out.shape == (1, latent_features)
    assert jnp.allclose(y, y_ref, atol=1e-5, rtol=1e-5)
    assert jnp.array_equal(lat_out, lat_ref)

    # Batched path: N independent block invocations amortized into one pallas_call.
    n = 8
    x0_b = jax.random.normal(k_x0b, (n, inner_nc, 1, 1), jnp.float32)
    lat_b = jax.random.normal(k_latb, (n, latent_features), jnp.float32)
    y_b, lat_b_out = lf_fully_connected_block_batched(
        x0_b, lat_b, w_packed, inner_nc=inner_nc, outer_nc=outer_nc
    )
    jax.block_until_ready(y_b)
    for i in range(n):
        yi_ref, _ = _reference(
            (x0_b[i:i + 1], lat_b[i:i + 1]), weight, bias, inner_nc=inner_nc, outer_nc=outer_nc
        )
        assert jnp.allclose(y_b[i:i + 1], yi_ref, atol=1e-5, rtol=1e-5)
    assert jnp.array_equal(lat_b_out, lat_b)

    print("KERNEL_OK")
</pallas_src>

<mosaic_0001>
module attributes {stable_mosaic.version = 11 : i64} {
  func.func @_lf_fc_kernel(%arg0: memref<1x41xf32, #tpu.memory_space<vmem>>, %arg1: memref<41x16xf32, #tpu.memory_space<vmem>>, %arg2: memref<1x16xf32, #tpu.memory_space<vmem>>) attributes {dimension_semantics = [], scalar_prefetch = 0 : i64, scratch_operands = 0 : i64, tpu.core_type = #tpu.core_type<tc>} {
    %c0 = arith.constant 0 : index
    %c0_0 = arith.constant 0 : index
    %0 = vector.load %arg0[%c0, %c0_0] : memref<1x41xf32, #tpu.memory_space<vmem>>, vector<1x41xf32>
    %c0_1 = arith.constant 0 : index
    %c0_2 = arith.constant 0 : index
    %1 = vector.load %arg1[%c0_1, %c0_2] : memref<41x16xf32, #tpu.memory_space<vmem>>, vector<41x16xf32>
    %cst = arith.constant dense<0.000000e+00> : vector<1x16xf32>
    %2 = tpu.matmul %0, %1, %cst {dimension_numbers = #tpu.dot_dimension_numbers<[1], [0], [0], [1], [0, 0, 1, 1], [], []>} : vector<1x41xf32>, vector<41x16xf32>, vector<1x16xf32> -> vector<1x16xf32>
    %cst_3 = arith.constant 0.000000e+00 : f32
    %3 = vector.broadcast %cst_3 : f32 to vector<1x16xf32>
    %4 = arith.cmpf oge, %2, %3 : vector<1x16xf32>
    %cst_4 = arith.constant 2.000000e-01 : f32
    %5 = vector.broadcast %cst_4 : f32 to vector<1x16xf32>
    %6 = arith.mulf %5, %2 : vector<1x16xf32>
    %7 = arith.select %4, %2, %6 : vector<1x16xi1>, vector<1x16xf32>
    %c0_5 = arith.constant 0 : index
    %c0_6 = arith.constant 0 : index
    %8 = vector.load %arg2[%c0_5, %c0_6] : memref<1x16xf32, #tpu.memory_space<vmem>>, vector<1x16xf32>
    tpu.vector_store %arg2[%c0_5, %c0_6], %7 {strides = array<i32>} : memref<1x16xf32, #tpu.memory_space<vmem>>, vector<1x16xf32>,
    return
  }
}

</mosaic_0001>

<llo_original>
// kernel: lf_fully_connected_block.1
$region0: #{lf_fully_connected_block.1}
  #allocation0 [shape = 'u32[]', space=smem, size = 0x4, offset = 0x4, fixed_abs, tag = 'smem constant byte address 0x4 - core index']
  #allocation1 [shape = 'u32[144,128]{1,0:T(1,128)}', space=vmem, size = 0x12000, scoped, tag = 'internal scratch']
  %s0 = inlined_call_operand.vmem [shape: f32[1,41], index: 0, kind: input, shape index: {}]
  %s1 = inlined_call_operand.vmem [shape: f32[41,16], index: 1, kind: input, shape index: {}]
  %s2 = inlined_call_operand.hbm [shape: f32[1,16], index: 2, kind: output, shape index: {}]
  %s3 = sld [smem:[#allocation0]]
  $region18: #{lf_fully_connected_block.1} parent=0
    _
  %s5 = ssub.s32 1, %s3
  %s6 = scalar_select 0, %s5, %s3
  $region1: #{lf_fully_connected_block.1} parent=0
    #allocation2 [shape = 'u8[512]{0}', space=vmem, size = 0x400, scoped, tag = 'output window, operand 0, single buffered']
    #allocation3 [shape = 's32[1]{0}', space=sflag, size = 0x4, scoped, tag = 'scoped memory for lf_fully_connected_block.1']
    %7 = vsyncpa [#allocation3], 0
    // Predicated region
    $region2: #{lf_fully_connected_block.1} parent=1 // pred_check
      _
    $region3: #{lf_fully_connected_block.1} parent=1 // pred_check_branch
      %9 = sbr.rel (0) target = $region5
    $region4: #{lf_fully_connected_block.1} parent=1 // pred_region
      _
    $region5: #{lf_fully_connected_block.1} parent=1 // pred_fallthru
      _
    // Predicated region
    $region6: #{lf_fully_connected_block.1} parent=1 // pred_check
      _
    $region7: #{lf_fully_connected_block.1} parent=1 // pred_check_branch
      %11 = sbr.rel (0) target = $region9
    $region8: #{lf_fully_connected_block.1} parent=1 // pred_region
      _
    $region9: #{lf_fully_connected_block.1} parent=1 // pred_fallthru
      _
    %v12 = vld [vmem:[%s0] sm:$0x1]
    %v13 = vld [vmem:[%s1] sm:$0xff]
    %v14 = vld [vmem:[%s1 + $0x8] sm:$0xff]
    %v15 = vld [vmem:[%s1 + $0x10] sm:$0xff]
    %v16 = vld [vmem:[%s1 + $0x18] sm:$0xff]
    %v17 = vld [vmem:[%s1 + $0x20] sm:$0xff]
    %v18 = vld [vmem:[%s1 + $0x28] sm:$0x1]
    %vm19 = vcmask 334848
    %v21 = vsel %vm19, %v12, 0
    %vm23 = vcmask 1040384
    %v25 = vsel %vm23, %v18, 0
    %27 = vmatprep.subr.mxu0 0.0
    %28 = vmatpush1.msra.mxu0 %v13
    %29 = vmatprep.subr.mxu0 0.0
    %30 = vmatpush1.msra.mxu0 %v14
    %31 = vmatprep.subr.mxu0 0.0
    %32 = vmatpush1.msra.mxu0 %v15
    %33 = vmatprep.subr.mxu0 0.0
    %34 = vmatpush1.msra.mxu0 %v16
    %35 = vmatprep.subr.mxu0 0.0
    %36 = vmatpush1.msra.mxu0 %v17
    %37 = vmatprep.subr.mxu0 0.0
    %38 = vmatpush1.msra.mxu0 %v25
    %39 = vmatprep.subr.mxu0 0.0
    %40 = vmatpush1.msra.mxu0 0.0
    %41 = vmatprep.subr.mxu0 0.0
    %42 = vmatpush1.msra.mxu0 0.0
    %43 = vmatprep.subr.mxu0 0.0
    %44 = vmatpush1.msra.mxu0 0.0
    %45 = vmatprep.subr.mxu0 0.0
    %46 = vmatpush1.msra.mxu0 0.0
    %47 = vmatprep.subr.mxu0 0.0
    %48 = vmatpush1.msra.mxu0 0.0
    %49 = vmatprep.subr.mxu0 0.0
    %50 = vmatpush1.msra.mxu0 0.0
    %51 = vmatprep.subr.mxu0 0.0
    %52 = vmatpush1.msra.mxu0 0.0
    %53 = vmatprep.subr.mxu0 0.0
    %54 = vmatpush1.msra.mxu0 0.0
    %55 = vmatprep.subr.mxu0 0.0
    %56 = vmatpush1.msra.mxu0 0.0
    %57 = vmatprep.subr.mxu0 0.0
    %58 = vmatpush1.msra.mxu0 0.0
    %59 = vmatprep.subr.mxu0 0.0
    %60 = vmatpush1.msra.mxu0 0.0
    %61 = vmatprep.subr.mxu0 0.0
    %62 = vmatpush1.msra.mxu0 0.0
    %63 = vmatprep.subr.mxu0 0.0
    %64 = vmatpush1.msra.mxu0 0.0
    %65 = vmatprep.subr.mxu0 0.0
    %66 = vmatpush1.msra.mxu0 0.0
    %67 = vmatprep.subr.mxu0 0.0
    %68 = vmatpush1.msra.mxu0 0.0
    %69 = vmatprep.subr.mxu0 0.0
    %70 = vmatpush1.msra.mxu0 0.0
    %71 = vmatprep.subr.mxu0 0.0
    %72 = vmatpush1.msra.mxu0 0.0
    %73 = vmatprep.subr.mxu0 0.0
    %74 = vmatpush1.msra.mxu0 0.0
    %75 = vmatprep.subr.mxu0 0.0
    %76 = vmatpush1.msra.mxu0 0.0
    %77 = vmatprep.subr.mxu0 0.0
    %78 = vmatpush1.msra.mxu0 0.0
    %79 = vmatprep.subr.mxu0 0.0
    %80 = vmatpush1.msra.mxu0 0.0
    %81 = vmatprep.subr.mxu0 0.0
    %82 = vmatpush1.msra.mxu0 0.0
    %83 = vmatprep.subr.mxu0 0.0
    %84 = vmatpush1.msra.mxu0 0.0
    %85 = vmatprep.subr.mxu0 0.0
    %86 = vmatpush1.msra.mxu0 0.0
    %87 = vmatprep.subr.mxu0 0.0
    %88 = vmatpush1.msra.mxu0 0.0
    %89 = vmatprep.subr.mxu0 0.0
    %90 = vmatpush1.msra.mxu0 0.0
    %91 = vmatprep.mubr.f32.mxu0 0.0
    %92 = vmatmul.mubr.f32.gmra.mrb[0].mxu0 %v21
    %v93 = vpop.f32.mrb[0].mxu0
    %v94 = vadd.f32 0.0, %v93
    %v95 = vpop.f32.mrb[0].mxu0
    %96 = vdwg.mxu0
    %vm97 = vcmp.ge.f32.partialorder %v94, 0.0
    %v98 = vmul.f32 %v94, 0.2
    %v99 = vsel %vm97, %v94, %v98
    %vm100 = vcmask 122880
    %101 = vst.msk [vmem:[#allocation2] sm:$0x1] %vm100, %v99
    // Predicated region
    $region10: #{lf_fully_connected_block.1} parent=1 // pred_check
      _
    $region11: #{lf_fully_connected_block.1} parent=1 // pred_check_branch
      %103 = sbr.rel (0) target = $region13
    $region12: #{lf_fully_connected_block.1} parent=1 // pred_region
      %s105 = ssub.s32 16, 16
      %106 = vsyncadd [#allocation3], %s105
      %s108 = sshll.u32 [#allocation2], 4
      %s109 = int_to_ptr.vmem [resolvable:$true] %s108
      %111 = dma.vmem_to_hbm [thread:$0]  %s109, 16, %s2, [#allocation3]
    $region13: #{lf_fully_connected_block.1} parent=1 // pred_fallthru
      _
    // Predicated region
    $region14: #{lf_fully_connected_block.1} parent=1 // pred_check
      _
    $region15: #{lf_fully_connected_block.1} parent=1 // pred_check_branch
      %113 = sbr.rel (0) target = $region17
    $region16: #{lf_fully_connected_block.1} parent=1 // pred_region
      %114 = dma.done [#allocation3], 16
    $region17: #{lf_fully_connected_block.1} parent=1 // pred_fallthru
      _
    %115 = vsyncpa [#allocation3], 1

</llo_original>
